<compile_context>
chip_gen: v5e
topology: v5e:2x2
jax: 0.10.0
libtpu: 0.0.40
codegen_flags: <defaults>
</compile_context>

<pallas_src>
import math
from functools import partial

import numpy as np
import jax
import jax.numpy as jnp
from jax import lax
from jax.experimental import pallas as pl
from jax.experimental.pallas import tpu as pltpu


def _round_up(a, b):
    return -(-a // b) * b


def _gmr_conv1d_kernel(xa_ref, xh_ref, w_ref, b_ref, o_ref, win_ref, *,
                       K, stride, dilation, Cin_pad, TL, HALO):
    """One (output-L tile, batch element) grid step.

    xa_ref : (1, S*Cin_pad, TL)     main input tile (phase-split, channel-padded)
    xh_ref : (1, S*Cin_pad, HALO)   right halo strip in the same layout
    w_ref  : (K, Cout, Cin_pad)     per-tap weights, block-diagonal across groups
    b_ref  : (Cout, 1)              bias (f32)
    o_ref  : (1, Cout, TL)          output tile (lane-dense, TL % 128 == 0)
    win_ref: (S*Cin_pad, TL+HALO)   contiguous window scratch (VMEM)
    """
    # Build the contiguous (TL + HALO)-wide window once: two lane-aligned stores,
    # no jnp.concatenate materializations anywhere in the kernel.
    win_ref[:, :TL] = xa_ref[0]
    win_ref[:, TL:] = xh_ref[0]

    # K accumulated MXU matmuls (static unroll; K is small). Groups are handled by
    # block-diagonal zeros baked into w_ref host-side, so each tap is a single matmul
    # over all (padded) input channels. Accumulation stays f32.
    acc = None
    for k in range(K):
        p = (k * dilation) % stride          # stride phase of this tap
        off = (k * dilation) // stride       # unit-stride lane offset of this tap
        xk = win_ref[p * Cin_pad:(p + 1) * Cin_pad, off:off + TL]   # (Cin_pad, TL)
        t = jnp.dot(w_ref[k], xk, preferred_element_type=jnp.float32)
        acc = t if acc is None else acc + t

    o_ref[0] = (acc + b_ref[...]).astype(o_ref.dtype)


def make_gmr_conv1d_params(key, in_channels, out_channels, kernel_size, groups=1,
                           gaussian_sigma_scale=2.355):
    """Deterministic parameter construction mirroring _GMR_ConvNd.__init__ /
    reset_parameters / _get_index_matrix (force_circular=True, gaussian_mixture_ring=True)."""
    K = kernel_size
    R = K // 2 + 1                      # num_rings (force_circular default)
    cin_g = in_channels // groups

    # ring index matrix (distance_transform_edt on a 1-D array == |i - K//2|)
    d = np.abs(np.arange(K) - K // 2).astype(np.float64)
    levels = np.linspace(0.0, K // 2 + 0.5, R + 1)
    M = np.stack(
        [((d >= levels[i]) & (d < levels[i + 1])).astype(np.float32) for i in range(R)],
        axis=0,
    )                                    # (R, K)

    # Gaussian-mixture diffusion of the ring index matrix
    band_width = K / (2 * (R - 1))
    sigma0 = band_width / gaussian_sigma_scale
    sigmas = np.clip(np.exp(np.log(np.full(R, sigma0))), 0.01, 2 * R)  # clip_sigma=True
    loc = np.arange(R)[:, None].astype(np.float64)
    mus = np.arange(R)[None, :].astype(np.float64)
    prob = 1.0 / (sigmas[None, :] * 2.5066) * np.exp(-0.5 * ((loc - mus) / sigmas[None, :]) ** 2)
    prob = prob.T                        # permute(1, 0)
    G = (prob @ M).astype(np.float32)    # (R, K) diffused index matrix

    # reset_parameters(): weight bound uses fan_in of the FULL kernel shape
    fan_in_full = cin_g * K
    bound_w = 1.0 / math.sqrt(fan_in_full)
    kw, kb = jax.random.split(key)
    W = jax.random.uniform(kw, (out_channels, cin_g, R), jnp.float32, -bound_w, bound_w)
    # bias bound uses fan_in of the ring weight
    fan_in_ring = cin_g * R
    bound_b = 1.0 / math.sqrt(fan_in_ring)
    b = jax.random.uniform(kb, (out_channels,), jnp.float32, -bound_b, bound_b)

    return W, jnp.asarray(G), b


def gmr_conv1d(x, W, G, b, *, stride=1, padding=0, dilation=1, groups=1,
               padding_mode="zeros"):
    N, Cin, L = x.shape
    Cout, cin_g, R = W.shape
    K = G.shape[1]
    S = int(stride)
    d = int(dilation)

    if Cin % groups or Cout % groups:
        raise ValueError("in_channels and out_channels must be divisible by groups")
    if cin_g != Cin // groups:
        raise ValueError("weight shape does not match in_channels // groups")
    cout_g = Cout // groups

    if isinstance(padding, str):
        if padding == "valid":
            pad_l = pad_r = 0
        elif padding == "same":
            if S != 1:
                raise ValueError("padding='same' requires stride=1")
            total = d * (K - 1)
            pad_l, pad_r = total // 2, total - total // 2
        else:
            raise ValueError(f"invalid padding string {padding!r}")
    else:
        pad_l = pad_r = int(padding)

    Lpad = L + pad_l + pad_r
    Lout = (Lpad - d * (K - 1) - 1) // S + 1
    if Lout < 1:
        raise ValueError("input too short for this kernel_size/stride/dilation")

    itemsize = x.dtype.itemsize
    sub = max(8, 32 // itemsize)          # sublane multiple: 8 f32 / 16 bf16 / 32 int8
    Cin_pad = _round_up(Cin, sub)

    max_off = ((K - 1) * d) // S          # widest tap offset in the phase-split layout
    HALO = _round_up(max(max_off, 1), 128)

    # ---- generation-aware tile size / VMEM budget ----
    try:
        vmem_cap = int(pltpu.get_tpu_info().vmem_capacity_bytes)
    except Exception:
        vmem_cap = 64 * 1024 * 1024       # conservative fallback (v7x per-core VMEM)
    budget = int(vmem_cap * 0.4)          # per-step footprint budget (headroom for Mosaic)
    vmem_limit = max(32 * 1024 * 1024,
                     min(int(vmem_cap * 0.75), 100 * 1024 * 1024))

    def step_bytes(tl):
        return ((2 * S * Cin_pad * (tl + HALO)       # xa + halo tiles, double-buffered
                 + S * Cin_pad * (tl + HALO)         # contiguous window scratch
                 + 2 * Cout * tl                     # output tile, double-buffered
                 + 2 * K * Cout * Cin_pad            # resident tap weights
                 ) * itemsize
                + Cout * tl * 4 + 2 * Cout * 4)      # f32 accumulator + bias

    # keep the f32 accumulator (re-read once per tap) bounded for very large Cout
    acc_cap = (2 * 1024 * 1024 // (4 * Cout)) // HALO * HALO
    tl_hi = max(HALO, min(_round_up(Lout, HALO), 4096, acc_cap))
    TL = HALO
    cand = HALO
    while cand <= tl_hi:
        if step_bytes(cand) <= budget:
            TL = cand
        cand += HALO

    Lout_pad = _round_up(Lout, TL)
    num_lt = Lout_pad // TL
    hblk = TL // HALO                      # halo-strip block-index multiplier
    Lph = _round_up(max(Lout_pad + HALO, -(-Lpad // S)), 128)

    # ---- 1) GMR weight synthesis + block-diagonal, per-tap layout (host side) ----
    w_full = jnp.einsum("ocr,rk->ock", W.astype(jnp.float32), G.astype(jnp.float32))
    w_g = jnp.transpose(w_full.reshape(groups, cout_g, cin_g, K), (3, 0, 1, 2))
    w_bd = jnp.einsum("kgoc,gh->kgohc", w_g, jnp.eye(groups, dtype=jnp.float32))
    w_bd = w_bd.reshape(K, Cout, Cin)
    # cast to x.dtype so bf16 inputs take the bf16 MXU path (accumulation stays f32)
    w_taps = jnp.pad(w_bd, ((0, 0), (0, 0), (0, Cin_pad - Cin))).astype(x.dtype)
    b2 = b.reshape(Cout, 1).astype(jnp.float32)
    # TODO(synk): for very large Cin with many groups (e.g. depthwise), move groups onto
    # a grid axis instead of carrying block-diagonal zero weight columns.

    # ---- 2) input layout: fused padding + optional stride-phase split ----
    # x_ph[n, p*Cin_pad + c, m] = x_conv_padded[n, c, m*S + p]  (c < Cin; zeros above)
    if padding_mode == "zeros":
        xp = jnp.pad(x, ((0, 0), (0, Cin_pad - Cin),
                         (pad_l, pad_r + Lph * S - Lpad)))          # one pad pass
    else:
        mode = {"reflect": "reflect", "replicate": "edge", "circular": "wrap"}[padding_mode]
        xp = jnp.pad(x, ((0, 0), (0, 0), (pad_l, pad_r)), mode=mode)
        # trailing/channel zero-pad only feeds output positions >= Lout (discarded)
        xp = jnp.pad(xp, ((0, 0), (0, Cin_pad - Cin), (0, Lph * S - Lpad)))

    if S == 1:
        x_ph = xp                                                    # no extra pass
    else:
        x_ph = (xp.reshape(N, Cin_pad, Lph, S)
                  .transpose(0, 3, 1, 2)
                  .reshape(N, S * Cin_pad, Lph))

    kernel = partial(_gmr_conv1d_kernel, K=K, stride=S, dilation=d,
                     Cin_pad=Cin_pad, TL=TL, HALO=HALO)

    cost = pl.CostEstimate(
        flops=2 * N * Cout * cin_g * K * Lout,
        transcendentals=0,
        bytes_accessed=int(x_ph.size * itemsize + w_taps.size * itemsize
                           + N * Cout * Lout_pad * itemsize),
    )

    out = pl.pallas_call(
        kernel,
        out_shape=jax.ShapeDtypeStruct((N, Cout, Lout_pad), x.dtype),
        grid=(num_lt, N),                  # Lout-tile axis leads (megacore split on v7x)
        in_specs=[
            # main x tile: (1, S*Cin_pad, TL) window starting at lt*TL
            pl.BlockSpec((1, S * Cin_pad, TL), lambda lt, n: (n, 0, lt)),
            # right halo strip: (1, S*Cin_pad, HALO) window starting at (lt+1)*TL
            pl.BlockSpec((1, S * Cin_pad, HALO), lambda lt, n: (n, 0, (lt + 1) * hblk)),
            # per-tap block-diagonal weights / bias: resident across the whole grid
            pl.BlockSpec((K, Cout, Cin_pad), lambda lt, n: (0, 0, 0)),
            pl.BlockSpec((Cout, 1), lambda lt, n: (0, 0)),
        ],
        out_specs=pl.BlockSpec((1, Cout, TL), lambda lt, n: (n, 0, lt)),
        scratch_shapes=[pltpu.VMEM((S * Cin_pad, TL + HALO), x.dtype)],
        compiler_params=pltpu.CompilerParams(
            dimension_semantics=("parallel", "parallel"),
            vmem_limit_bytes=vmem_limit,
        ),
        cost_estimate=cost,
    )(x_ph, x_ph, w_taps, b2)

    if Lout_pad == Lout:
        return out
    # TODO(synk): mask only the final tile's store (or fuse this slice into the consumer)
    # to avoid the extra output pass when Lout is not a multiple of TL.
    return out[:, :, :Lout]


def _reference(x, W, G, b, *, stride, padding, dilation, groups):
    # pure-JAX reference (equivalent to _make_weight_matrix + F.conv1d)
    w_full = jnp.einsum("ocr,rk->ock", W, G)
    x_pad = jnp.pad(x, ((0, 0), (0, 0), (padding, padding)))
    y = lax.conv_general_dilated(
        x_pad, w_full, window_strides=(stride,), padding="VALID",
        rhs_dilation=(dilation,), dimension_numbers=("NCH", "OIH", "NCH"),
        feature_group_count=groups,
    )
    return y + b[None, :, None]


if __name__ == "__main__":
    key = jax.random.PRNGKey(0)
    kx, kp, kx2, kp2 = jax.random.split(key, 4)

    # GMR_Conv1d(in_channels=4, out_channels=8, kernel_size=5, padding=2)
    N, Cin, L = 2, 4, 16
    Cout, K = 8, 5
    x = jax.random.normal(kx, (N, Cin, L), dtype=jnp.float32)
    W, G, b = make_gmr_conv1d_params(kp, Cin, Cout, K, groups=1)

    out = gmr_conv1d(x, W, G, b, stride=1, padding=2, dilation=1, groups=1)
    out = jax.block_until_ready(out)
    ref = _reference(x, W, G, b, stride=1, padding=2, dilation=1, groups=1)
    np.testing.assert_allclose(np.asarray(out), np.asarray(ref), rtol=1e-5, atol=1e-5)

    # also exercise the strided / grouped path:
    # GMR_Conv1d(in_channels=4, out_channels=4, kernel_size=3, stride=2, padding=1, groups=2)
    x2 = jax.random.normal(kx2, (N, Cin, L), dtype=jnp.float32)
    W2, G2, b2 = make_gmr_conv1d_params(kp2, Cin, 4, 3, groups=2)
    out2 = gmr_conv1d(x2, W2, G2, b2, stride=2, padding=1, dilation=1, groups=2)
    out2 = jax.block_until_ready(out2)
    ref2 = _reference(x2, W2, G2, b2, stride=2, padding=1, dilation=1, groups=2)
    np.testing.assert_allclose(np.asarray(out2), np.asarray(ref2), rtol=1e-5, atol=1e-5)

    print("KERNEL_OK")
</pallas_src>

<mosaic_0001>
module attributes {stable_mosaic.version = 11 : i64} {
  func.func @_gmr_conv1d_kernel(%arg0: i32, %arg1: i32, %arg2: memref<1x8x128xf32, #tpu.memory_space<vmem>>, %arg3: memref<1x8x128xf32, #tpu.memory_space<vmem>>, %arg4: memref<5x8x8xf32, #tpu.memory_space<vmem>>, %arg5: memref<8x1xf32, #tpu.memory_space<vmem>>, %arg6: memref<1x8x128xf32, #tpu.memory_space<vmem>>, %arg7: memref<8x256xf32, #tpu.memory_space<vmem>>) attributes {dimension_semantics = [#tpu.dimension_semantics<parallel>, #tpu.dimension_semantics<parallel>], iteration_bounds = array<i64: 1, 2>, scalar_prefetch = 0 : i64, scratch_operands = 1 : i64, tpu.core_type = #tpu.core_type<tc>, window_params = [{transform_indices = @transform_0, window_bounds = array<i64: 1, 8, 128>}, {transform_indices = @transform_1, window_bounds = array<i64: 1, 8, 128>}, {pipeline_mode = #tpu.pipeline_mode<synchronous>, transform_indices = @transform_2, window_bounds = array<i64: 5, 8, 8>}, {pipeline_mode = #tpu.pipeline_mode<synchronous>, transform_indices = @transform_3, window_bounds = array<i64: 8, 1>}, {transform_indices = @transform_4, window_bounds = array<i64: 1, 8, 128>}]} {
    %c0 = arith.constant 0 : index
    %c0_0 = arith.constant 0 : index
    %c0_1 = arith.constant 0 : index
    %0 = vector.load %arg2[%c0, %c0_0, %c0_1] : memref<1x8x128xf32, #tpu.memory_space<vmem>>, vector<1x8x128xf32>
    %1 = vector.shape_cast %0 : vector<1x8x128xf32> to vector<8x128xf32>
    %c0_2 = arith.constant 0 : index
    %c0_3 = arith.constant 0 : index
    %2 = vector.load %arg7[%c0_2, %c0_3] : memref<8x256xf32, #tpu.memory_space<vmem>>, vector<8x128xf32>
    tpu.vector_store %arg7[%c0_2, %c0_3], %1 {strides = array<i32>} : memref<8x256xf32, #tpu.memory_space<vmem>>, vector<8x128xf32>,
    %c0_4 = arith.constant 0 : index
    %c0_5 = arith.constant 0 : index
    %c0_6 = arith.constant 0 : index
    %3 = vector.load %arg3[%c0_4, %c0_5, %c0_6] : memref<1x8x128xf32, #tpu.memory_space<vmem>>, vector<1x8x128xf32>
    %4 = vector.shape_cast %3 : vector<1x8x128xf32> to vector<8x128xf32>
    %c0_7 = arith.constant 0 : index
    %c128 = arith.constant 128 : index
    %5 = vector.load %arg7[%c0_7, %c128] : memref<8x256xf32, #tpu.memory_space<vmem>>, vector<8x128xf32>
    tpu.vector_store %arg7[%c0_7, %c128], %4 {strides = array<i32>} : memref<8x256xf32, #tpu.memory_space<vmem>>, vector<8x128xf32>,
    %c0_8 = arith.constant 0 : index
    %c0_9 = arith.constant 0 : index
    %6 = vector.load %arg7[%c0_8, %c0_9] : memref<8x256xf32, #tpu.memory_space<vmem>>, vector<8x128xf32>
    %c0_10 = arith.constant 0 : index
    %c0_11 = arith.constant 0 : index
    %c0_12 = arith.constant 0 : index
    %7 = vector.load %arg4[%c0_10, %c0_11, %c0_12] : memref<5x8x8xf32, #tpu.memory_space<vmem>>, vector<1x8x8xf32>
    %8 = vector.shape_cast %7 : vector<1x8x8xf32> to vector<8x8xf32>
    %cst = arith.constant dense<0.000000e+00> : vector<8x128xf32>
    %9 = tpu.matmul %8, %6, %cst {dimension_numbers = #tpu.dot_dimension_numbers<[1], [0], [0], [1], [0, 0, 1, 1], [], []>} : vector<8x8xf32>, vector<8x128xf32>, vector<8x128xf32> -> vector<8x128xf32>
    %c0_13 = arith.constant 0 : index
    %c1 = arith.constant 1 : index
    %10 = vector.load %arg7[%c0_13, %c1] : memref<8x256xf32, #tpu.memory_space<vmem>>, vector<8x128xf32>
    %c1_14 = arith.constant 1 : index
    %c0_15 = arith.constant 0 : index
    %c0_16 = arith.constant 0 : index
    %11 = vector.load %arg4[%c1_14, %c0_15, %c0_16] : memref<5x8x8xf32, #tpu.memory_space<vmem>>, vector<1x8x8xf32>
    %12 = vector.shape_cast %11 : vector<1x8x8xf32> to vector<8x8xf32>
    %cst_17 = arith.constant dense<0.000000e+00> : vector<8x128xf32>
    %13 = tpu.matmul %12, %10, %cst_17 {dimension_numbers = #tpu.dot_dimension_numbers<[1], [0], [0], [1], [0, 0, 1, 1], [], []>} : vector<8x8xf32>, vector<8x128xf32>, vector<8x128xf32> -> vector<8x128xf32>
    %14 = arith.addf %9, %13 : vector<8x128xf32>
    %c0_18 = arith.constant 0 : index
    %c2 = arith.constant 2 : index
    %15 = vector.load %arg7[%c0_18, %c2] : memref<8x256xf32, #tpu.memory_space<vmem>>, vector<8x128xf32>
    %c2_19 = arith.constant 2 : index
    %c0_20 = arith.constant 0 : index
    %c0_21 = arith.constant 0 : index
    %16 = vector.load %arg4[%c2_19, %c0_20, %c0_21] : memref<5x8x8xf32, #tpu.memory_space<vmem>>, vector<1x8x8xf32>
    %17 = vector.shape_cast %16 : vector<1x8x8xf32> to vector<8x8xf32>
    %cst_22 = arith.constant dense<0.000000e+00> : vector<8x128xf32>
    %18 = tpu.matmul %17, %15, %cst_22 {dimension_numbers = #tpu.dot_dimension_numbers<[1], [0], [0], [1], [0, 0, 1, 1], [], []>} : vector<8x8xf32>, vector<8x128xf32>, vector<8x128xf32> -> vector<8x128xf32>
    %19 = arith.addf %14, %18 : vector<8x128xf32>
    %c0_23 = arith.constant 0 : index
    %c3 = arith.constant 3 : index
    %20 = vector.load %arg7[%c0_23, %c3] : memref<8x256xf32, #tpu.memory_space<vmem>>, vector<8x128xf32>
    %c3_24 = arith.constant 3 : index
    %c0_25 = arith.constant 0 : index
    %c0_26 = arith.constant 0 : index
    %21 = vector.load %arg4[%c3_24, %c0_25, %c0_26] : memref<5x8x8xf32, #tpu.memory_space<vmem>>, vector<1x8x8xf32>
    %22 = vector.shape_cast %21 : vector<1x8x8xf32> to vector<8x8xf32>
    %cst_27 = arith.constant dense<0.000000e+00> : vector<8x128xf32>
    %23 = tpu.matmul %22, %20, %cst_27 {dimension_numbers = #tpu.dot_dimension_numbers<[1], [0], [0], [1], [0, 0, 1, 1], [], []>} : vector<8x8xf32>, vector<8x128xf32>, vector<8x128xf32> -> vector<8x128xf32>
    %24 = arith.addf %19, %23 : vector<8x128xf32>
    %c0_28 = arith.constant 0 : index
    %c4 = arith.constant 4 : index
    %25 = vector.load %arg7[%c0_28, %c4] : memref<8x256xf32, #tpu.memory_space<vmem>>, vector<8x128xf32>
    %c4_29 = arith.constant 4 : index
    %c0_30 = arith.constant 0 : index
    %c0_31 = arith.constant 0 : index
    %26 = vector.load %arg4[%c4_29, %c0_30, %c0_31] : memref<5x8x8xf32, #tpu.memory_space<vmem>>, vector<1x8x8xf32>
    %27 = vector.shape_cast %26 : vector<1x8x8xf32> to vector<8x8xf32>
    %cst_32 = arith.constant dense<0.000000e+00> : vector<8x128xf32>
    %28 = tpu.matmul %27, %25, %cst_32 {dimension_numbers = #tpu.dot_dimension_numbers<[1], [0], [0], [1], [0, 0, 1, 1], [], []>} : vector<8x8xf32>, vector<8x128xf32>, vector<8x128xf32> -> vector<8x128xf32>
    %29 = arith.addf %24, %28 : vector<8x128xf32>
    %c0_33 = arith.constant 0 : index
    %c0_34 = arith.constant 0 : index
    %30 = vector.load %arg5[%c0_33, %c0_34] : memref<8x1xf32, #tpu.memory_space<vmem>>, vector<8x1xf32>
    %31 = vector.broadcast %30 : vector<8x1xf32> to vector<8x128xf32>
    %32 = arith.addf %29, %31 : vector<8x128xf32>
    %c0_35 = arith.constant 0 : index
    %c0_36 = arith.constant 0 : index
    %c0_37 = arith.constant 0 : index
    %33 = vector.load %arg6[%c0_35, %c0_36, %c0_37] : memref<1x8x128xf32, #tpu.memory_space<vmem>>, vector<1x8x128xf32>
    %34 = vector.shape_cast %33 : vector<1x8x128xf32> to vector<8x128xf32>
    %35 = vector.shape_cast %32 : vector<8x128xf32> to vector<1x8x128xf32>
    tpu.vector_store %arg6[%c0_35, %c0_36, %c0_37], %35 {strides = array<i32>} : memref<1x8x128xf32, #tpu.memory_space<vmem>>, vector<1x8x128xf32>,
    return
  }
  func.func @transform_0(%arg0: i32, %arg1: i32) -> (i32, i32, i32) {
    %c0_i32 = arith.constant 0 : i32
    %c0_i32_0 = arith.constant 0 : i32
    return %arg1, %c0_i32, %arg0 : i32, i32, i32
  }
  func.func @transform_1(%arg0: i32, %arg1: i32) -> (i32, i32, i32) {
    %c1_i32 = arith.constant 1 : i32
    %0 = arith.addi %arg0, %c1_i32 : i32
    %c1_i32_0 = arith.constant 1 : i32
    %1 = arith.muli %0, %c1_i32_0 : i32
    %c0_i32 = arith.constant 0 : i32
    %c0_i32_1 = arith.constant 0 : i32
    return %arg1, %c0_i32, %1 : i32, i32, i32
  }
  func.func @transform_2(%arg0: i32, %arg1: i32) -> (i32, i32, i32) {
    %c0_i32 = arith.constant 0 : i32
    %c0_i32_0 = arith.constant 0 : i32
    %c0_i32_1 = arith.constant 0 : i32
    %c0_i32_2 = arith.constant 0 : i32
    return %c0_i32, %c0_i32_0, %c0_i32_1 : i32, i32, i32
  }
  func.func @transform_3(%arg0: i32, %arg1: i32) -> (i32, i32) {
    %c0_i32 = arith.constant 0 : i32
    %c0_i32_0 = arith.constant 0 : i32
    %c0_i32_1 = arith.constant 0 : i32
    return %c0_i32, %c0_i32_0 : i32, i32
  }
  func.func @transform_4(%arg0: i32, %arg1: i32) -> (i32, i32, i32) {
    %c0_i32 = arith.constant 0 : i32
    %c0_i32_0 = arith.constant 0 : i32
    return %arg1, %c0_i32, %arg0 : i32, i32, i32
  }
}

</mosaic_0001>

<llo_original>
// kernel: tpu_custom_call.1
$region0: #{tpu_custom_call.1}
  #allocation0 [shape = 'u32[]', space=smem, size = 0x4, offset = 0x4, fixed_abs, tag = 'smem constant byte address 0x4 - core index']
  #allocation1 [shape = 'u32[72,128]{1,0:T(1,128)}', space=vmem, size = 0x9000, scoped, tag = 'internal scratch']
  #allocation2 [shape = 'f32[8,256]{1,0:T(8,128)}', space=vmem, size = 0x2000, scoped, tag = 'scratch operand']
  %s0 = inlined_call_operand.hbm [shape: f32[2,8,256], index: 0, kind: input, shape index: {}]
  %s1 = inlined_call_operand.hbm [shape: f32[2,8,256], index: 1, kind: input, shape index: {}]
  %s2 = inlined_call_operand.hbm [shape: f32[5,8,8], index: 2, kind: input, shape index: {}]
  %s3 = inlined_call_operand.vmem [shape: f32[8,1], index: 3, kind: input, shape index: {}]
  %s4 = inlined_call_operand.hbm [shape: f32[2,8,128], index: 4, kind: output, shape index: {}]
  %s5 = sld [smem:[#allocation0]]
  $region61: #{tpu_custom_call.1} parent=0
    _
  %s7 = ssub.s32 1, %s5
  %s8 = scalar_select 0, %s7, %s5
  $region1: #{tpu_custom_call.1} parent=0
    #allocation3 [shape = 'u8[8192]{0}', space=vmem, size = 0x2000, scoped, tag = 'input window, operand 0']
    #allocation4 [shape = 's32[2]{0}', space=sflag, size = 0x8, scoped, tag = 'scoped memory for tpu_custom_call.1']
    #allocation5 [shape = 's32[2]{0}', space=sflag, size = 0x8, scoped, tag = 'scoped memory for tpu_custom_call.1']
    #allocation6 [shape = 'u8[8192]{0}', space=vmem, size = 0x2000, scoped, tag = 'input window, operand 1']
    #allocation7 [shape = 's32[2]{0}', space=sflag, size = 0x8, scoped, tag = 'scoped memory for tpu_custom_call.1']
    #allocation8 [shape = 'u8[20480]{0}', space=vmem, size = 0x5000, scoped, tag = 'input window, operand 2, single buffered']
    #allocation9 [shape = 'u8[8192]{0}', space=vmem, size = 0x2000, scoped, tag = 'output window, operand 0']
    %9 = vsyncpa [#allocation4], 0
    %s10 = scalar_lea.sflag [#allocation4], 1
    %11 = vsyncpa %s10, 0
    %12 = vsyncpa [#allocation7], 0
    %s13 = scalar_lea.sflag [#allocation7], 1
    %14 = vsyncpa %s13, 0
    %15 = vsyncpa [#allocation5], 0
    %s16 = scalar_lea.sflag [#allocation5], 1
    %17 = vsyncpa %s16, 0
    loop: start=0, step=1, limit=4
    $region2: #{tpu_custom_call.1} parent=1 // loop_pre_header
      _
    $region3: #{tpu_custom_call.1} parent=1 // loop_header
      %s19 = sphi 0, %s23
      %p20 = scmp.ge.s32.totalorder %s19, 4
      %s26 = sphi 0, %s38
      %s27 = sphi 0, %s34
      %s28 = sphi 0, %s26
      %s29 = sphi 0, %s27
      %s30 = sphi 0, %s28
      %s31 = sphi 0, %s29
      %s43 = sphi 0, %s45
      %s46 = sphi 0, %s43
      %s47 = sphi 0, %s46
      %s63 = sphi 0, %s47
      %s73 = sphi 0, %s75
      %s76 = sphi 0, %s73
      %s77 = sphi 0, %s76
      %s93 = sphi 0, %s77
      %s97 = sphi 0, %s97
      %s99 = sphi 0, %s97
      %s100 = sphi 0, %s99
      %s114 = sphi 0, %s100
      %s118 = sphi 0, %s118
      %s120 = sphi 0, %s118
      %s121 = sphi 0, %s120
      %s135 = sphi 0, %s121
      %s143 = sphi 0, %s145
      %s146 = sphi 0, %s143
      %s147 = sphi 0, %s146
      %s163 = sphi 0, %s147
    $region4: #{tpu_custom_call.1} parent=1 // loop_header_branch
      %22 = sbr.rel (%p20) target = $region8
    $region5: #{tpu_custom_call.1} parent=1 // loop_body
      %s24 = ssub.s32 %s19, 1
      %s25 = ssub.s32 %s19, 2
      %s32 = sadd.s32 1, %s27
      %p33 = scmp.ge.s32.totalorder %s32, 2
      %s34 = scalar_select %p33, 0, %s32
      %s35 = sadd.s32 1, %s26
      %s36 = scalar_select %p33, %s35, %s26
      %p37 = scmp.ge.s32.totalorder %s36, 1
      %s38 = scalar_select %p37, 0, %s36
      %s39 = ssub.s32 %s27, %s34
      %s40 = ssub.s32 %s26, %s38
      %s41 = sor.u32 %s39, %s40
      %p42 = scmp.eq.s32.totalorder %s41, 0
      %s44 = sadd.s32 %s43, 1
      %s45 = scalar_select %p42, %s43, %s44
      %p48 = pneg %p42
      %p49 = scmp.eq.s32.totalorder %s19, 1
      %p50 = por %p48, %p49
      %p51 = scmp.ne.s32.totalorder %s43, %s46
      %p52 = scmp.eq.s32.totalorder %s19, 0
      %p53 = por %p51, %p52
      %p54 = scmp.ne.s32.totalorder %s43, %s46
      %p55 = scmp.eq.s32.totalorder %s24, 1
      %p56 = por %p54, %p55
      %p57 = scmp.ne.s32.totalorder %s46, %s47
      %p58 = scmp.eq.s32.totalorder %s24, 0
      %p59 = por %p57, %p58
      %p60 = scmp.ne.s32.totalorder %s46, %s47
      %p61 = scmp.eq.s32.totalorder %s25, 1
      %p62 = por %p60, %p61
      %p64 = scmp.ne.s32.totalorder %s47, %s63
      %p65 = scmp.eq.s32.totalorder %s25, 0
      %p66 = por %p64, %p65
      %s67 = sadd.s32 %s26, 1
      %s68 = sadd.s32 %s38, 1
      %s69 = ssub.s32 %s27, %s34
      %s70 = ssub.s32 %s67, %s68
      %s71 = sor.u32 %s69, %s70
      %p72 = scmp.eq.s32.totalorder %s71, 0
      %s74 = sadd.s32 %s73, 1
      %s75 = scalar_select %p72, %s73, %s74
      %p78 = pneg %p72
      %p79 = scmp.eq.s32.totalorder %s19, 1
      %p80 = por %p78, %p79
      %p81 = scmp.ne.s32.totalorder %s73, %s76
      %p82 = scmp.eq.s32.totalorder %s19, 0
      %p83 = por %p81, %p82
      %p84 = scmp.ne.s32.totalorder %s73, %s76
      %p85 = scmp.eq.s32.totalorder %s24, 1
      %p86 = por %p84, %p85
      %p87 = scmp.ne.s32.totalorder %s76, %s77
      %p88 = scmp.eq.s32.totalorder %s24, 0
      %p89 = por %p87, %p88
      %p90 = scmp.ne.s32.totalorder %s76, %s77
      %p91 = scmp.eq.s32.totalorder %s25, 1
      %p92 = por %p90, %p91
      %p94 = scmp.ne.s32.totalorder %s77, %s93
      %p95 = scmp.eq.s32.totalorder %s25, 0
      %p96 = por %p94, %p95
      %s98 = sadd.s32 %s97, 1
      %p101 = scmp.eq.s32.totalorder %s19, 1
      %p102 = scmp.ne.s32.totalorder %s97, %s99
      %p103 = scmp.eq.s32.totalorder %s19, 0
      %p104 = por %p102, %p103
      %p105 = scmp.ne.s32.totalorder %s97, %s99
      %p106 = scmp.eq.s32.totalorder %s24, 1
      %p107 = por %p105, %p106
      %p108 = scmp.ne.s32.totalorder %s99, %s100
      %p109 = scmp.eq.s32.totalorder %s24, 0
      %p110 = por %p108, %p109
      %p111 = scmp.ne.s32.totalorder %s99, %s100
      %p112 = scmp.eq.s32.totalorder %s25, 1
      %p113 = por %p111, %p112
      %p115 = scmp.ne.s32.totalorder %s100, %s114
      %p116 = scmp.eq.s32.totalorder %s25, 0
      %p117 = por %p115, %p116
      %s119 = sadd.s32 %s118, 1
      %p122 = scmp.eq.s32.totalorder %s19, 1
      %p123 = scmp.ne.s32.totalorder %s118, %s120
      %p124 = scmp.eq.s32.totalorder %s19, 0
      %p125 = por %p123, %p124
      %p126 = scmp.ne.s32.totalorder %s118, %s120
      %p127 = scmp.eq.s32.totalorder %s24, 1
      %p128 = por %p126, %p127
      %p129 = scmp.ne.s32.totalorder %s120, %s121
      %p130 = scmp.eq.s32.totalorder %s24, 0
      %p131 = por %p129, %p130
      %p132 = scmp.ne.s32.totalorder %s120, %s121
      %p133 = scmp.eq.s32.totalorder %s25, 1
      %p134 = por %p132, %p133
      %p136 = scmp.ne.s32.totalorder %s121, %s135
      %p137 = scmp.eq.s32.totalorder %s25, 0
      %p138 = por %p136, %p137
      %s139 = ssub.s32 %s27, %s34
      %s140 = ssub.s32 %s26, %s38
      %s141 = sor.u32 %s139, %s140
      %p142 = scmp.eq.s32.totalorder %s141, 0
      %s144 = sadd.s32 %s143, 1
      %s145 = scalar_select %p142, %s143, %s144
      %p148 = pneg %p142
      %p149 = scmp.eq.s32.totalorder %s19, 1
      %p150 = por %p148, %p149
      %p151 = scmp.ne.s32.totalorder %s143, %s146
      %p152 = scmp.eq.s32.totalorder %s19, 0
      %p153 = por %p151, %p152
      %p154 = scmp.ne.s32.totalorder %s143, %s146
      %p155 = scmp.eq.s32.totalorder %s24, 1
      %p156 = por %p154, %p155
      %p157 = scmp.ne.s32.totalorder %s146, %s147
      %p158 = scmp.eq.s32.totalorder %s24, 0
      %p159 = por %p157, %p158
      %p160 = scmp.ne.s32.totalorder %s146, %s147
      %p161 = scmp.eq.s32.totalorder %s25, 1
      %p162 = por %p160, %p161
      %p164 = scmp.ne.s32.totalorder %s147, %s163
      %p165 = scmp.eq.s32.totalorder %s25, 0
      %p166 = por %p164, %p165
      %p167 = scmp.le.s32.totalorder 1, %s19
      %p168 = scmp.lt.s32.totalorder %s19, 3
      %p169 = pnand %p167, %p168
      %p170 = pneg %p169
      // Predicated region
      $region9: #{tpu_custom_call.1} parent=5 // pred_check
        _
      $region10: #{tpu_custom_call.1} parent=5 // pred_check_branch
        %172 = sbr.rel (%p169) target = $region12
      $region11: #{tpu_custom_call.1} parent=5 // pred_region
        %s173 = ssub.s32 %s19, 1
        // Predicated region
        $region13: #{tpu_custom_call.1} parent=11 // pred_check
          %p174 = pneg %p110
        $region14: #{tpu_custom_call.1} parent=11 // pred_check_branch
          %176 = sbr.rel (%p174) target = $region16
        $region15: #{tpu_custom_call.1} parent=11 // pred_region
          %178 = vsyncadd [#allocation7], 0
          %s179 = sshll.u32 %s2, 4
          %s180 = int_to_ptr.hbm [resolvable:$true] %s179
          %s181 = sshll.u32 [#allocation8], 4
          %s182 = int_to_ptr.vmem [resolvable:$true] %s181
          %187 = dma.hbm_to_vmem [thread:$0]  %s180, 640, %s182, [#allocation7], 128, 128, 8
        $region16: #{tpu_custom_call.1} parent=11 // pred_fallthru
          _
        // Predicated region
        $region17: #{tpu_custom_call.1} parent=11 // pred_check
          %p188 = pneg %p131
        $region18: #{tpu_custom_call.1} parent=11 // pred_check_branch
          %190 = sbr.rel (%p188) target = $region20
        $region19: #{tpu_custom_call.1} parent=11 // pred_region
          _
        $region20: #{tpu_custom_call.1} parent=11 // pred_fallthru
          _
      $region12: #{tpu_custom_call.1} parent=5 // pred_fallthru
        _
      %p191 = scmp.lt.s32.totalorder %s19, 2
      // Predicated region
      $region21: #{tpu_custom_call.1} parent=5 // pred_check
        %p192 = pneg %p191
      $region22: #{tpu_custom_call.1} parent=5 // pred_check_branch
        %194 = sbr.rel (%p192) target = $region24
      $region23: #{tpu_custom_call.1} parent=5 // pred_region
        // Predicated region
        $region25: #{tpu_custom_call.1} parent=23 // pred_check
          %p195 = pneg %p53
        $region26: #{tpu_custom_call.1} parent=23 // pred_check_branch
          %197 = sbr.rel (%p195) target = $region28
        $region27: #{tpu_custom_call.1} parent=23 // pred_region
          %s198 = sand.u32 %s43, 1
          %s199 = scalar_lea.sflag [#allocation4], %s198
          %s200 = sand.u32 %s43, 1
          %s201 = smul.addr %s200, 8
          %s202 = scalar_lea.vmem [#allocation3], %s201
          %204 = vsyncadd %s199, 0
          %s205 = smul.addr %s27, 2
          %s206 = sadd.s32 %s26, %s205
          %s207 = smul.addr %s206, 8
          %s208 = scalar_lea.hbm %s0, %s207
          %s210 = sshll.u32 %s208, 4
          %s211 = int_to_ptr.hbm [resolvable:$true] %s210
          %s212 = sshll.u32 %s202, 4
          %s213 = int_to_ptr.vmem [resolvable:$true] %s212
          %215 = dma.hbm_to_vmem [thread:$0]  %s211, 128, %s213, %s199
        $region28: #{tpu_custom_call.1} parent=23 // pred_fallthru
          _
        // Predicated region
        $region29: #{tpu_custom_call.1} parent=23 // pred_check
          %p216 = pneg %p83
        $region30: #{tpu_custom_call.1} parent=23 // pred_check_branch
          %218 = sbr.rel (%p216) target = $region32
        $region31: #{tpu_custom_call.1} parent=23 // pred_region
          %s219 = sand.u32 %s19, 1
          %s220 = scalar_lea.sflag [#allocation7], %s219
          %s221 = sand.u32 %s73, 1
          %s222 = smul.addr %s221, 8
          %s223 = scalar_lea.vmem [#allocation6], %s222
          %s224 = sadd.s32 %s26, 1
          %226 = vsyncadd %s220, 0
          %s227 = smul.addr %s27, 2
          %s228 = sadd.s32 %s224, %s227
          %s229 = smul.addr %s228, 8
          %s230 = scalar_lea.hbm %s1, %s229
          %s232 = sshll.u32 %s230, 4
          %s233 = int_to_ptr.hbm [resolvable:$true] %s232
          %s234 = sshll.u32 %s223, 4
          %s235 = int_to_ptr.vmem [resolvable:$true] %s234
          %237 = dma.hbm_to_vmem [thread:$0]  %s233, 128, %s235, %s220
        $region32: #{tpu_custom_call.1} parent=23 // pred_fallthru
          _
      $region24: #{tpu_custom_call.1} parent=5 // pred_fallthru
        _
      %p238 = scmp.le.s32.totalorder 1, %s19
      %p239 = scmp.lt.s32.totalorder %s19, 3
      %p240 = pnand %p238, %p239
      %p241 = pneg %p240
      // Predicated region
      $region33: #{tpu_custom_call.1} parent=5 // pred_check
        _
      $region34: #{tpu_custom_call.1} parent=5 // pred_check_branch
        %243 = sbr.rel (%p240) target = $region36
      $region35: #{tpu_custom_call.1} parent=5 // pred_region
        %s244 = ssub.s32 %s19, 1
        %s245 = sand.u32 %s46, 1
        %s246 = scalar_lea.sflag [#allocation4], %s245
        %s247 = sand.u32 %s46, 1
        %s248 = smul.addr %s247, 8
        %s249 = scalar_lea.vmem [#allocation3], %s248
        // Predicated region
        $region37: #{tpu_custom_call.1} parent=35 // pred_check
          %p250 = pneg %p59
        $region38: #{tpu_custom_call.1} parent=35 // pred_check_branch
          %252 = sbr.rel (%p250) target = $region40
        $region39: #{tpu_custom_call.1} parent=35 // pred_region
          %254 = dma.done %s246, 128
        $region40: #{tpu_custom_call.1} parent=35 // pred_fallthru
          _
        %s255 = sand.u32 %s24, 1
        %s256 = scalar_lea.sflag [#allocation7], %s255
        %s257 = sand.u32 %s76, 1
        %s258 = smul.addr %s257, 8
        %s259 = scalar_lea.vmem [#allocation6], %s258
        // Predicated region
        $region41: #{tpu_custom_call.1} parent=35 // pred_check
          %p260 = pneg %p89
        $region42: #{tpu_custom_call.1} parent=35 // pred_check_branch
          %262 = sbr.rel (%p260) target = $region44
        $region43: #{tpu_custom_call.1} parent=35 // pred_region
          %264 = dma.done %s256, 128
        $region44: #{tpu_custom_call.1} parent=35 // pred_fallthru
          _
        // Predicated region
        $region45: #{tpu_custom_call.1} parent=35 // pred_check
          %p265 = pneg %p110
        $region46: #{tpu_custom_call.1} parent=35 // pred_check_branch
          %267 = sbr.rel (%p265) target = $region48
        $region47: #{tpu_custom_call.1} parent=35 // pred_region
          %269 = dma.done [#allocation7], 640
        $region48: #{tpu_custom_call.1} parent=35 // pred_fallthru
          _
        %s270 = sand.u32 %s46, 1
        %s271 = scalar_lea.sflag [#allocation4], %s270
        %s272 = sand.u32 %s46, 1
        %s273 = smul.addr %s272, 8
        %s274 = scalar_lea.vmem [#allocation3], %s273
        %p275 = pneg %p59
        %p276 = pneg %p56
        %s277 = sand.u32 %s24, 1
        %s278 = scalar_lea.sflag [#allocation7], %s277
        %s279 = sand.u32 %s76, 1
        %s280 = smul.addr %s279, 8
        %s281 = scalar_lea.vmem [#allocation6], %s280
        %p282 = pneg %p89
        %p283 = pneg %p86
        %p284 = pneg %p110
        %p285 = pneg %p107
        %p286 = pneg %p131
        %p287 = pneg %p128
        %p288 = pneg %p159
        %p289 = pneg %p156
        %s290 = sand.u32 %s146, 1
        %s291 = scalar_lea.sflag [#allocation5], %s290
        %s292 = sand.u32 %s146, 1
        %s293 = smul.addr %s292, 8
        %s294 = scalar_lea.vmem [#allocation9], %s293
        %s295 = sadd.s32 %s28, 1
        %v296 = vld [vmem:[%s249] sm:$0xff]
        %297 = vst [vmem:[#allocation2] sm:$0xff] %v296
        %v298 = vld [vmem:[%s259] sm:$0xff]
        %299 = vst [vmem:[#allocation2 + $0x8] sm:$0xff] %v298
        %v300 = vld [vmem:[#allocation2] sm:$0xff]
        %v301 = vld [vmem:[#allocation8] sm:$0xff]
        %v302 = vld [vmem:[#allocation2] sm:$0xff]
        %v303 = vld [vmem:[#allocation2 + $0x8] sm:$0xff]
        %s304 = scalar_lea.vmem [#allocation8], 8
        %v305 = vld [vmem:[%s304] sm:$0xff]
        %308 = vrot.lane.b32.xlu0 %v302, 127
        %v309 = vpop.permute.xlu0 %308
        %310 = vrot.lane.b32.xlu0 %v303, 127
        %v311 = vpop.permute.xlu0 %310
        %vm312 = vcmask 1039360
        %v313 = vsel %vm312, %v309, %v311
        %vm315 = vcmask 64512
        %v317 = vsel %vm315, %v305, 0
        %319 = vmatpush.msra.mxu0 0.0
        %320 = vmatpush.msra.mxu0 0.0
        %321 = vmatpush.msra.mxu0 0.0
        %322 = vmatpush.msra.mxu0 0.0
        %323 = vmatpush.msra.mxu0 0.0
        %324 = vmatpush.msra.mxu0 0.0
        %325 = vmatpush.msra.mxu0 0.0
        %326 = vmatpush.msra.mxu0 0.0
        %327 = vmatpush.msra.mxu0 0.0
        %328 = vmatpush.msra.mxu0 0.0
        %329 = vmatpush.msra.mxu0 0.0
        %330 = vmatpush.msra.mxu0 0.0
        %331 = vmatpush.msra.mxu0 0.0
        %332 = vmatpush.msra.mxu0 0.0
        %333 = vmatpush.msra.mxu0 0.0
        %334 = vmatpush.msra.mxu0 %v313
        %335 = vmatmul.f32.gmra.mxu0 %v317
        %v336 = vpop.f32.mrf.mxu0
        %v337 = vadd.f32 0.0, %v336
        %338 = vdwg.mxu0
        %v340 = vsel %vm315, %v301, 0
        %342 = vmatpush.msra.mxu0 0.0
        %343 = vmatpush.msra.mxu0 0.0
        %344 = vmatpush.msra.mxu0 0.0
        %345 = vmatpush.msra.mxu0 0.0
        %346 = vmatpush.msra.mxu0 0.0
        %347 = vmatpush.msra.mxu0 0.0
        %348 = vmatpush.msra.mxu0 0.0
        %349 = vmatpush.msra.mxu0 0.0
        %350 = vmatpush.msra.mxu0 0.0
        %351 = vmatpush.msra.mxu0 0.0
        %352 = vmatpush.msra.mxu0 0.0
        %353 = vmatpush.msra.mxu0 0.0
        %354 = vmatpush.msra.mxu0 0.0
        %355 = vmatpush.msra.mxu0 0.0
        %356 = vmatpush.msra.mxu0 0.0
        %357 = vmatpush.msra.mxu0 %v300
        %358 = vmatmul.f32.gmra.mxu0 %v340
        %v359 = vpop.f32.mrf.mxu0
        %v360 = vadd.f32 %v337, %v359
        %361 = vdwg.mxu0
        %s362 = scalar_lea.vmem [#allocation8], 16
        %v363 = vld [vmem:[%s362] sm:$0xff]
        %364 = vrot.lane.b32.xlu0 %v302, 126
        %v365 = vpop.permute.xlu0 %364
        %366 = vrot.lane.b32.xlu0 %v303, 126
        %v367 = vpop.permute.xlu0 %366
        %vm368 = vcmask 1031168
        %v369 = vsel %vm368, %v365, %v367
        %v372 = vsel %vm315, %v363, 0
        %374 = vmatpush.msra.mxu0 0.0
        %375 = vmatpush.msra.mxu0 0.0
        %376 = vmatpush.msra.mxu0 0.0
        %377 = vmatpush.msra.mxu0 0.0
        %378 = vmatpush.msra.mxu0 0.0
        %379 = vmatpush.msra.mxu0 0.0
        %380 = vmatpush.msra.mxu0 0.0
        %381 = vmatpush.msra.mxu0 0.0
        %382 = vmatpush.msra.mxu0 0.0
        %383 = vmatpush.msra.mxu0 0.0
        %384 = vmatpush.msra.mxu0 0.0
        %385 = vmatpush.msra.mxu0 0.0
        %386 = vmatpush.msra.mxu0 0.0
        %387 = vmatpush.msra.mxu0 0.0
        %388 = vmatpush.msra.mxu0 0.0
        %389 = vmatpush.msra.mxu0 %v369
        %390 = vmatmul.f32.gmra.mxu0 %v372
        %v391 = vpop.f32.mrf.mxu0
        %v392 = vadd.f32 0.0, %v391
        %393 = vdwg.mxu0
        %v394 = vadd.f32 %v360, %v392
        %s395 = scalar_lea.vmem [#allocation8], 24
        %v396 = vld [vmem:[%s395] sm:$0xff]
        %397 = vrot.lane.b32.xlu0 %v302, 125
        %v398 = vpop.permute.xlu0 %397
        %399 = vrot.lane.b32.xlu0 %v303, 125
        %v400 = vpop.permute.xlu0 %399
        %vm401 = vcmask 1022976
        %v402 = vsel %vm401, %v398, %v400
        %v405 = vsel %vm315, %v396, 0
        %407 = vmatpush.msra.mxu0 0.0
        %408 = vmatpush.msra.mxu0 0.0
        %409 = vmatpush.msra.mxu0 0.0
        %410 = vmatpush.msra.mxu0 0.0
        %411 = vmatpush.msra.mxu0 0.0
        %412 = vmatpush.msra.mxu0 0.0
        %413 = vmatpush.msra.mxu0 0.0
        %414 = vmatpush.msra.mxu0 0.0
        %415 = vmatpush.msra.mxu0 0.0
        %416 = vmatpush.msra.mxu0 0.0
        %417 = vmatpush.msra.mxu0 0.0
        %418 = vmatpush.msra.mxu0 0.0
        %419 = vmatpush.msra.mxu0 0.0
        %420 = vmatpush.msra.mxu0 0.0
        %421 = vmatpush.msra.mxu0 0.0
        %422 = vmatpush.msra.mxu0 %v402
        %423 = vmatmul.f32.gmra.mxu0 %v405
        %v424 = vpop.f32.mrf.mxu0
        %v425 = vadd.f32 0.0, %v424
        %426 = vdwg.mxu0
        %v427 = vadd.f32 %v394, %v425
        %s428 = scalar_lea.vmem [#allocation8], 32
        %v429 = vld [vmem:[%s428] sm:$0xff]
        %430 = vrot.lane.b32.xlu0 %v302, 124
        %v431 = vpop.permute.xlu0 %430
        %432 = vrot.lane.b32.xlu0 %v303, 124
        %v433 = vpop.permute.xlu0 %432
        %vm434 = vcmask 1014784
        %v435 = vsel %vm434, %v431, %v433
        %v438 = vsel %vm315, %v429, 0
        %440 = vmatpush.msra.mxu0 0.0
        %441 = vmatpush.msra.mxu0 0.0
        %442 = vmatpush.msra.mxu0 0.0
        %443 = vmatpush.msra.mxu0 0.0
        %444 = vmatpush.msra.mxu0 0.0
        %445 = vmatpush.msra.mxu0 0.0
        %446 = vmatpush.msra.mxu0 0.0
        %447 = vmatpush.msra.mxu0 0.0
        %448 = vmatpush.msra.mxu0 0.0
        %449 = vmatpush.msra.mxu0 0.0
        %450 = vmatpush.msra.mxu0 0.0
        %451 = vmatpush.msra.mxu0 0.0
        %452 = vmatpush.msra.mxu0 0.0
        %453 = vmatpush.msra.mxu0 0.0
        %454 = vmatpush.msra.mxu0 0.0
        %455 = vmatpush.msra.mxu0 %v435
        %456 = vmatmul.f32.gmra.mxu0 %v438
        %v457 = vpop.f32.mrf.mxu0
        %v458 = vadd.f32 0.0, %v457
        %459 = vdwg.mxu0
        %v460 = vadd.f32 %v427, %v458
        %v461 = vld [vmem:[%s3] sm:$0xff]
        %463 = vset.pattern.permute.xlu0 0
        %464 = vperm.xlu0 %463, %v461
        %v465 = vpop.permute.xlu0 %464
        %v467 = vadd.f32 %v460, %v465
        %468 = vst [vmem:[%s294] sm:$0xff] %v467
        %s469 = sand.u32 %s146, 1
        %s470 = scalar_lea.sflag [#allocation5], %s469
        %s471 = sand.u32 %s146, 1
        %s472 = smul.addr %s471, 8
        %s473 = scalar_lea.vmem [#allocation9], %s472
        // Predicated region
        $region49: #{tpu_custom_call.1} parent=35 // pred_check
          %p474 = pneg %p156
        $region50: #{tpu_custom_call.1} parent=35 // pred_check_branch
          %476 = sbr.rel (%p474) target = $region52
        $region51: #{tpu_custom_call.1} parent=35 // pred_region
          %478 = vsyncadd %s470, 0
          %s479 = sadd.s32 %s28, %s29
          %s480 = smul.addr %s479, 8
          %s481 = scalar_lea.hbm %s4, %s480
          %s483 = sshll.u32 %s473, 4
          %s484 = int_to_ptr.vmem [resolvable:$true] %s483
          %s485 = sshll.u32 %s481, 4
          %s486 = int_to_ptr.hbm [resolvable:$true] %s485
          %488 = dma.vmem_to_hbm [thread:$0]  %s484, 128, %s486, %s470
        $region52: #{tpu_custom_call.1} parent=35 // pred_fallthru
          _
      $region36: #{tpu_custom_call.1} parent=5 // pred_fallthru
        _
      %p489 = scmp.le.s32.totalorder 2, %s19
      // Predicated region
      $region53: #{tpu_custom_call.1} parent=5 // pred_check
        %p490 = pneg %p489
      $region54: #{tpu_custom_call.1} parent=5 // pred_check_branch
        %492 = sbr.rel (%p490) target = $region56
      $region55: #{tpu_custom_call.1} parent=5 // pred_region
        %s493 = ssub.s32 %s19, 2
        // Predicated region
        $region57: #{tpu_custom_call.1} parent=55 // pred_check
          %p494 = pneg %p162
        $region58: #{tpu_custom_call.1} parent=55 // pred_check_branch
          %496 = sbr.rel (%p494) target = $region60
        $region59: #{tpu_custom_call.1} parent=55 // pred_region
          %s497 = sand.u32 %s147, 1
          %s498 = scalar_lea.sflag [#allocation5], %s497
          %s499 = sand.u32 %s147, 1
          %s500 = smul.addr %s499, 8
          %s501 = scalar_lea.vmem [#allocation9], %s500
          %503 = dma.done %s498, 128
        $region60: #{tpu_custom_call.1} parent=55 // pred_fallthru
          _
      $region56: #{tpu_custom_call.1} parent=5 // pred_fallthru
        _
    $region6: #{tpu_custom_call.1} parent=1 // loop_footer
      %s23 = sadd.s32 1, %s19
    $region7: #{tpu_custom_call.1} parent=1 // loop_footer_branch
      %18 = sbr.rel target = $region3
    $region8: #{tpu_custom_call.1} parent=1 // loop_exit
      _
    %504 = vsyncpa [#allocation4], 1
    %s505 = scalar_lea.sflag [#allocation4], 1
    %506 = vsyncpa %s505, 1
    %507 = vsyncpa [#allocation7], 1
    %s508 = scalar_lea.sflag [#allocation7], 1
    %509 = vsyncpa %s508, 1
    %510 = vsyncpa [#allocation5], 1
    %s511 = scalar_lea.sflag [#allocation5], 1
    %512 = vsyncpa %s511, 1

</llo_original>
